<compile_context>
chip_gen: v5e
topology: v5e:2x2
jax: 0.10.0
libtpu: 0.0.40
codegen_flags: <defaults>
</compile_context>

<pallas_src>
import jax
import jax.numpy as jnp
from jax import lax
from jax.experimental import pallas as pl
from jax.experimental.pallas import tpu as pltpu

LANE = 128
TARGET_TILE_BYTES = 4 * 1024 * 1024    # per-input block: 2 in x 2 bufs x 4 MiB = 16 MiB
VMEM_LIMIT_BYTES = 32 * 1024 * 1024    # safe on v5e/v6e/v7x, covers the tiles above
SMALL_INPUT_BYTES = 256 * 1024         # below this, plain XLA beats a pallas_call


def _round_up(x, m):
    return ((x + m - 1) // m) * m


def _num_core_splits():
    # v7x exposes 2 TensorCores per chip; v5e / v6e have 1.
    try:
        kind = jax.devices()[0].device_kind.lower().replace(" ", "")
    except Exception:
        return 1
    return 2 if ("v7" in kind or "7x" in kind) else 1


def _mse_kernel_factory(rows, tile_rows, tiles_per_core, in_dtype):
    """rows / tile_rows / tiles_per_core are Python ints baked into the kernel."""
    groups = tile_rows // 8                      # whole (8,128)-vreg row groups per tile
    needs_cast = jnp.dtype(in_dtype) != jnp.dtype(jnp.float32)

    def mse_kernel(p_ref, t_ref, o_ref, acc_ref):
        c = pl.program_id(0)                     # core-split index
        i = pl.program_id(1)                     # tile index within this core's range

        @pl.when(i == 0)
        def _():
            acc_ref[...] = jnp.zeros_like(acc_ref)

        p = p_ref[...]
        t = t_ref[...]
        if needs_cast:                           # skip no-op casts for f32 inputs
            p = p.astype(jnp.float32)
            t = t.astype(jnp.float32)
        d = p - t
        sq = d * d

        tile_idx = c * tiles_per_core + i
        is_full = (tile_idx + 1) * tile_rows <= rows

        @pl.when(is_full)
        def _():
            # Full tile: bare VPU add tree into the single-vreg accumulator.
            acc_ref[...] += jnp.sum(sq.reshape(groups, 8, LANE), axis=0)

        @pl.when(jnp.logical_not(is_full))
        def _():
            # Ragged last tile / clamped duplicated tile: zero rows past `rows`.
            # The mask is applied to d*d via select, so undefined (possibly NaN/Inf)
            # VMEM rows from the partial block DMA never reach the accumulator.
            row_in_tile = lax.broadcasted_iota(jnp.int32, (tile_rows, LANE), 0)
            global_row = tile_idx * tile_rows + row_in_tile
            masked = jnp.where(global_row < rows, sq, 0.0)
            acc_ref[...] += jnp.sum(masked.reshape(groups, 8, LANE), axis=0)

        @pl.when(i == pl.num_programs(1) - 1)
        def _():
            o_ref[0, 0] = jnp.sum(acc_ref[...])  # single cross-lane reduce per core

    return mse_kernel


def _mse_sum_pallas(p2d, t2d, rows, tile_rows, hw_splits):
    num_tiles = pl.cdiv(rows, tile_rows)
    splits = max(1, min(hw_splits, num_tiles))   # skip the core split for tiny grids
    tiles_per_core = pl.cdiv(num_tiles, splits)

    def in_index_map(c, i):
        # Clamp so an uneven core split never issues an out-of-range block index;
        # the in-kernel row mask zeroes the duplicated tile's contribution.
        return (jnp.minimum(c * tiles_per_core + i, num_tiles - 1), 0)

    def build(core_sem):
        return pl.pallas_call(
            _mse_kernel_factory(rows, tile_rows, tiles_per_core, p2d.dtype),
            out_shape=jax.ShapeDtypeStruct((splits, 1), jnp.float32),
            grid_spec=pltpu.PrefetchScalarGridSpec(
                num_scalar_prefetch=0,
                grid=(splits, tiles_per_core),
                in_specs=[
                    pl.BlockSpec((tile_rows, LANE), in_index_map),
                    pl.BlockSpec((tile_rows, LANE), in_index_map),
                ],
                out_specs=pl.BlockSpec(
                    (1, 1), lambda c, i: (c, 0), memory_space=pltpu.SMEM
                ),
                scratch_shapes=[pltpu.VMEM((8, LANE), jnp.float32)],
            ),
            compiler_params=pltpu.CompilerParams(
                dimension_semantics=(core_sem, pltpu.ARBITRARY),
                vmem_limit_bytes=VMEM_LIMIT_BYTES,
            ),
        )

    if splits > 1:
        try:
            # Genuine 2-TensorCore sharding on v7x (each TC drives its own HBM stream).
            partials = build(pltpu.CORE_PARALLEL)(p2d, t2d)
        except Exception:
            partials = build(pltpu.PARALLEL)(p2d, t2d)
    else:
        partials = build(pltpu.ARBITRARY)(p2d, t2d)

    return jnp.sum(partials)


def mse_loss(y_pred, y_true, *, tile_bytes=TARGET_TILE_BYTES, force_kernel=False):
    """mean((y_pred - y_true)**2), matching torch.mean(torch.pow(y_pred - y_true, 2))."""
    assert y_pred.shape == y_true.shape
    if y_pred.dtype != y_true.dtype:
        y_true = y_true.astype(y_pred.dtype)
    n = y_pred.size
    assert n > 0

    itemsize = jnp.dtype(y_pred.dtype).itemsize
    p_flat = jnp.ravel(y_pred)
    t_flat = jnp.ravel(y_true)
    rows = n // LANE

    # Tiny inputs (or <128 elements): a pallas_call's fixed overhead dominates; let XLA fuse.
    if rows == 0 or (not force_kernel and n * itemsize < SMALL_INPUT_BYTES):
        d = p_flat.astype(jnp.float32) - t_flat.astype(jnp.float32)
        return jnp.sum(d * d) / jnp.float32(n)

    n_main = rows * LANE
    p2d = p_flat[:n_main].reshape(rows, LANE)
    t2d = t_flat[:n_main].reshape(rows, LANE)

    # Dtype-aware tile sizing: constant bytes per block, rows a multiple of the
    # packed-sublane granularity (8 for 4B, 16 for 2B, 32 for 1B dtypes).
    sublane = max(8, 32 // itemsize)
    rows_budget = max(sublane, (tile_bytes // (LANE * itemsize)) // sublane * sublane)
    tile_rows = min(rows_budget, _round_up(rows, sublane))

    total = _mse_sum_pallas(p2d, t2d, rows, tile_rows, _num_core_splits())

    rem = n - n_main
    if rem:
        # <128-element remainder summed wrapper-side instead of padding both inputs in HBM.
        dp = p_flat[n_main:].astype(jnp.float32) - t_flat[n_main:].astype(jnp.float32)
        total = total + jnp.sum(dp * dp)

    return total / jnp.float32(n)


if __name__ == "__main__":
    key = jax.random.PRNGKey(0)

    # Primary example at small NCHW-like shapes (kernel forced on despite small size).
    k1, k2 = jax.random.split(key)
    y_pred = jax.random.normal(k1, (2, 4, 16, 16), dtype=jnp.float32)
    y_true = jax.random.normal(k2, (2, 4, 16, 16), dtype=jnp.float32)
    loss = mse_loss(y_pred, y_true, force_kernel=True)
    jax.block_until_ready(loss)
    ref = jnp.mean((y_pred - y_true) ** 2)
    assert jnp.allclose(loss, ref, rtol=1e-5, atol=1e-6), (loss, ref)

    # Multi-tile accumulation path (several full tiles, no masking).
    k3, k4 = jax.random.split(k2)
    a = jax.random.normal(k3, (2, 64, 128), dtype=jnp.float32)
    b = jax.random.normal(k4, (2, 64, 128), dtype=jnp.float32)
    loss2 = mse_loss(a, b, tile_bytes=16 * 1024, force_kernel=True)
    ref2 = jnp.mean((a - b) ** 2)
    assert jnp.allclose(loss2, ref2, rtol=1e-4, atol=1e-6), (loss2, ref2)

    # Ragged last tile (masked in-kernel) + <128-element wrapper remainder, no padding.
    k5, k6 = jax.random.split(k4)
    c = jax.random.normal(k5, (3, 7, 250), dtype=jnp.float32)
    d = jax.random.normal(k6, (3, 7, 250), dtype=jnp.float32)
    loss3 = mse_loss(c, d, tile_bytes=16 * 1024, force_kernel=True)
    ref3 = jnp.mean((c - d) ** 2)
    assert jnp.allclose(loss3, ref3, rtol=1e-4, atol=1e-6), (loss3, ref3)

    jax.block_until_ready((loss2, loss3))
    print("KERNEL_OK")
</pallas_src>

<mosaic_0001>
module attributes {stable_mosaic.version = 11 : i64} {
  func.func @mse_kernel(%arg0: i32, %arg1: i32, %arg2: memref<16x128xf32, #tpu.memory_space<vmem>>, %arg3: memref<16x128xf32, #tpu.memory_space<vmem>>, %arg4: memref<1x1xf32, #tpu.memory_space<smem>>, %arg5: memref<8x128xf32, #tpu.memory_space<vmem>>) attributes {dimension_semantics = [#tpu.dimension_semantics<arbitrary>, #tpu.dimension_semantics<arbitrary>], iteration_bounds = array<i64: 1, 1>, scalar_prefetch = 0 : i64, scratch_operands = 1 : i64, tpu.core_type = #tpu.core_type<tc>, window_params = [{transform_indices = @transform_0, window_bounds = array<i64: 16, 128>}, {transform_indices = @transform_1, window_bounds = array<i64: 16, 128>}, {transform_indices = @transform_2, window_bounds = array<i64: 1, 1>}]} {
    %c0_i32 = arith.constant 0 : i32
    %0 = arith.cmpi eq, %arg1, %c0_i32 : i32
    %1 = arith.extui %0 : i1 to i32
    %c0_i32_0 = arith.constant 0 : i32
    %2 = arith.cmpi ne, %1, %c0_i32_0 : i32
    scf.if %2 {
      %cst = arith.constant 0.000000e+00 : f32
      %20 = vector.broadcast %cst : f32 to vector<8x128xf32>
      %c0_10 = arith.constant 0 : index
      %c0_11 = arith.constant 0 : index
      %21 = vector.load %arg5[%c0_10, %c0_11] : memref<8x128xf32, #tpu.memory_space<vmem>>, vector<8x128xf32>
      tpu.vector_store %arg5[%c0_10, %c0_11], %20 {strides = array<i32>} : memref<8x128xf32, #tpu.memory_space<vmem>>, vector<8x128xf32>,
    } else {
    }
    %c0 = arith.constant 0 : index
    %c0_1 = arith.constant 0 : index
    %3 = vector.load %arg2[%c0, %c0_1] : memref<16x128xf32, #tpu.memory_space<vmem>>, vector<16x128xf32>
    %c0_2 = arith.constant 0 : index
    %c0_3 = arith.constant 0 : index
    %4 = vector.load %arg3[%c0_2, %c0_3] : memref<16x128xf32, #tpu.memory_space<vmem>>, vector<16x128xf32>
    %5 = arith.subf %3, %4 : vector<16x128xf32>
    %6 = arith.mulf %5, %5 : vector<16x128xf32>
    %c1_i32 = arith.constant 1 : i32
    %7 = arith.muli %arg0, %c1_i32 : i32
    %8 = arith.addi %7, %arg1 : i32
    %c1_i32_4 = arith.constant 1 : i32
    %9 = arith.addi %8, %c1_i32_4 : i32
    %c16_i32 = arith.constant 16 : i32
    %10 = arith.muli %9, %c16_i32 : i32
    %c16_i32_5 = arith.constant 16 : i32
    %11 = arith.cmpi sle, %10, %c16_i32_5 : i32
    %12 = arith.extui %11 : i1 to i32
    %c0_i32_6 = arith.constant 0 : i32
    %13 = arith.cmpi ne, %12, %c0_i32_6 : i32
    scf.if %13 {
      %c0_10 = arith.constant 0 : index
      %c0_11 = arith.constant 0 : index
      %20 = vector.load %arg5[%c0_10, %c0_11] : memref<8x128xf32, #tpu.memory_space<vmem>>, vector<8x128xf32>
      %21 = vector.shape_cast %6 : vector<16x128xf32> to vector<2x8x128xf32>
      %cst = arith.constant dense<0.000000e+00> : vector<8x128xf32>
      %22 = vector.multi_reduction <add>, %21, %cst [0] : vector<2x8x128xf32> to vector<8x128xf32>
      %23 = arith.addf %20, %22 : vector<8x128xf32>
      %c0_12 = arith.constant 0 : index
      %c0_13 = arith.constant 0 : index
      %24 = vector.load %arg5[%c0_12, %c0_13] : memref<8x128xf32, #tpu.memory_space<vmem>>, vector<8x128xf32>
      tpu.vector_store %arg5[%c0_12, %c0_13], %23 {strides = array<i32>} : memref<8x128xf32, #tpu.memory_space<vmem>>, vector<8x128xf32>,
    } else {
    }
    %true = arith.constant true
    %14 = arith.xori %11, %true : i1
    %15 = arith.extui %14 : i1 to i32
    %c0_i32_7 = arith.constant 0 : i32
    %16 = arith.cmpi ne, %15, %c0_i32_7 : i32
    scf.if %16 {
      %20 = tpu.iota {dimensions = array<i32: 0>} : vector<16x128xi32>
      %c16_i32_10 = arith.constant 16 : i32
      %21 = arith.muli %8, %c16_i32_10 : i32
      %22 = vector.broadcast %21 : i32 to vector<16x128xi32>
      %23 = arith.addi %22, %20 : vector<16x128xi32>
      %c16_i32_11 = arith.constant 16 : i32
      %24 = vector.broadcast %c16_i32_11 : i32 to vector<16x128xi32>
      %25 = arith.cmpi slt, %23, %24 : vector<16x128xi32>
      %cst = arith.constant 0.000000e+00 : f32
      %26 = vector.broadcast %cst : f32 to vector<16x128xf32>
      %27 = arith.select %25, %6, %26 : vector<16x128xi1>, vector<16x128xf32>
      %c0_12 = arith.constant 0 : index
      %c0_13 = arith.constant 0 : index
      %28 = vector.load %arg5[%c0_12, %c0_13] : memref<8x128xf32, #tpu.memory_space<vmem>>, vector<8x128xf32>
      %29 = vector.shape_cast %27 : vector<16x128xf32> to vector<2x8x128xf32>
      %cst_14 = arith.constant dense<0.000000e+00> : vector<8x128xf32>
      %30 = vector.multi_reduction <add>, %29, %cst_14 [0] : vector<2x8x128xf32> to vector<8x128xf32>
      %31 = arith.addf %28, %30 : vector<8x128xf32>
      %c0_15 = arith.constant 0 : index
      %c0_16 = arith.constant 0 : index
      %32 = vector.load %arg5[%c0_15, %c0_16] : memref<8x128xf32, #tpu.memory_space<vmem>>, vector<8x128xf32>
      tpu.vector_store %arg5[%c0_15, %c0_16], %31 {strides = array<i32>} : memref<8x128xf32, #tpu.memory_space<vmem>>, vector<8x128xf32>,
    } else {
    }
    %c0_i32_8 = arith.constant 0 : i32
    %17 = arith.cmpi eq, %arg1, %c0_i32_8 : i32
    %18 = arith.extui %17 : i1 to i32
    %c0_i32_9 = arith.constant 0 : i32
    %19 = arith.cmpi ne, %18, %c0_i32_9 : i32
    scf.if %19 {
      %c0_10 = arith.constant 0 : index
      %c0_11 = arith.constant 0 : index
      %20 = vector.load %arg5[%c0_10, %c0_11] : memref<8x128xf32, #tpu.memory_space<vmem>>, vector<8x128xf32>
      %21 = vector.shape_cast %20 : vector<8x128xf32> to vector<1x8x128xf32>
      %cst = arith.constant dense<0.000000e+00> : vector<1xf32>
      %22 = vector.multi_reduction <add>, %21, %cst [1, 2] : vector<1x8x128xf32> to vector<1xf32>
      %23 = vector.shape_cast %22 : vector<1xf32> to vector<1x1x1xf32>
      %24 = vector.extract %23[0, 0, 0] : f32 from vector<1x1x1xf32>
      %c0_12 = arith.constant 0 : index
      %c0_13 = arith.constant 0 : index
      %25 = memref.load %arg4[%c0_12, %c0_13] : memref<1x1xf32, #tpu.memory_space<smem>>
      memref.store %24, %arg4[%c0_12, %c0_13] : memref<1x1xf32, #tpu.memory_space<smem>>
    } else {
    }
    return
  }
  func.func @transform_0(%arg0: i32, %arg1: i32) -> (i32, i32) {
    %c1_i32 = arith.constant 1 : i32
    %0 = arith.muli %arg0, %c1_i32 : i32
    %1 = arith.addi %0, %arg1 : i32
    %c0_i32 = arith.constant 0 : i32
    %2 = arith.minsi %1, %c0_i32 : i32
    %c0_i32_0 = arith.constant 0 : i32
    %c0_i32_1 = arith.constant 0 : i32
    return %2, %c0_i32_0 : i32, i32
  }
  func.func @transform_1(%arg0: i32, %arg1: i32) -> (i32, i32) {
    %c1_i32 = arith.constant 1 : i32
    %0 = arith.muli %arg0, %c1_i32 : i32
    %1 = arith.addi %0, %arg1 : i32
    %c0_i32 = arith.constant 0 : i32
    %2 = arith.minsi %1, %c0_i32 : i32
    %c0_i32_0 = arith.constant 0 : i32
    %c0_i32_1 = arith.constant 0 : i32
    return %2, %c0_i32_0 : i32, i32
  }
  func.func @transform_2(%arg0: i32, %arg1: i32) -> (i32, i32) {
    %c0_i32 = arith.constant 0 : i32
    %c0_i32_0 = arith.constant 0 : i32
    return %arg0, %c0_i32 : i32, i32
  }
}

</mosaic_0001>

<llo_original>
// kernel: tpu_custom_call.1
$region0: #{tpu_custom_call.1}
  #allocation0 [shape = 'u32[]', space=smem, size = 0x4, offset = 0x4, fixed_abs, tag = 'smem constant byte address 0x4 - core index']
  #allocation1 [shape = 'u32[72,128]{1,0:T(1,128)}', space=vmem, size = 0x9000, scoped, tag = 'internal scratch']
  #allocation2 [shape = 'f32[8,128]{1,0:T(8,128)}', space=vmem, size = 0x1000, scoped, tag = 'scratch operand']
  %s0 = inlined_call_operand.hbm [shape: f32[16,128], index: 0, kind: input, shape index: {}]
  %s1 = inlined_call_operand.hbm [shape: f32[16,128], index: 1, kind: input, shape index: {}]
  %s2 = inlined_call_operand.hbm [shape: f32[1,1], index: 2, kind: output, shape index: {}]
  %s3 = sld [smem:[#allocation0]]
  $region42: #{tpu_custom_call.1} parent=0
    _
  %s5 = ssub.s32 1, %s3
  %s6 = scalar_select 0, %s5, %s3
  $region1: #{tpu_custom_call.1} parent=0
    #allocation3 [shape = 'u8[8192]{0}', space=vmem, size = 0x2000, scoped, tag = 'input window, operand 0, single buffered']
    #allocation4 [shape = 's32[1]{0}', space=sflag, size = 0x4, scoped, tag = 'scoped memory for tpu_custom_call.1']
    #allocation5 [shape = 's32[1]{0}', space=sflag, size = 0x4, scoped, tag = 'scoped memory for tpu_custom_call.1']
    #allocation6 [shape = 'u8[8192]{0}', space=vmem, size = 0x2000, scoped, tag = 'input window, operand 1, single buffered']
    #allocation7 [shape = 's32[1]{0}', space=sflag, size = 0x4, scoped, tag = 'scoped memory for tpu_custom_call.1']
    #allocation8 [shape = 'u8[512]{0}', space=smem, size = 0x200, scoped, tag = 'output window, operand 0, single buffered']
    %7 = vsyncpa [#allocation4], 0
    %8 = vsyncpa [#allocation7], 0
    %9 = vsyncpa [#allocation5], 0
    // Predicated region
    $region2: #{tpu_custom_call.1} parent=1 // pred_check
      _
    $region3: #{tpu_custom_call.1} parent=1 // pred_check_branch
      %11 = sbr.rel (0) target = $region5
    $region4: #{tpu_custom_call.1} parent=1 // pred_region
      %s12 = sadd.s32 0, 0
      %p13 = scmp.lt.s32.totalorder %s12, 0
      %s14 = scalar_select %p13, %s12, 0
      %s15 = smul.u32 2, %s14
      %17 = vsyncadd [#allocation4], 0
      %s18 = smul.addr %s15, 8
      %s19 = scalar_lea.hbm %s0, %s18
      %s20 = sshll.u32 %s19, 4
      %s21 = int_to_ptr.hbm [resolvable:$true] %s20
      %s22 = sshll.u32 [#allocation3], 4
      %s23 = int_to_ptr.vmem [resolvable:$true] %s22
      %28 = dma.hbm_to_vmem [thread:$0]  %s21, 256, %s23, [#allocation4], 128, 128, 8
    $region5: #{tpu_custom_call.1} parent=1 // pred_fallthru
      _
    // Predicated region
    $region6: #{tpu_custom_call.1} parent=1 // pred_check
      _
    $region7: #{tpu_custom_call.1} parent=1 // pred_check_branch
      %30 = sbr.rel (0) target = $region9
    $region8: #{tpu_custom_call.1} parent=1 // pred_region
      %s31 = sadd.s32 0, 0
      %p32 = scmp.lt.s32.totalorder %s31, 0
      %s33 = scalar_select %p32, %s31, 0
      %s34 = smul.u32 2, %s33
      %36 = vsyncadd [#allocation7], 0
      %s37 = smul.addr %s34, 8
      %s38 = scalar_lea.hbm %s1, %s37
      %s39 = sshll.u32 %s38, 4
      %s40 = int_to_ptr.hbm [resolvable:$true] %s39
      %s41 = sshll.u32 [#allocation6], 4
      %s42 = int_to_ptr.vmem [resolvable:$true] %s41
      %47 = dma.hbm_to_vmem [thread:$0]  %s40, 256, %s42, [#allocation7], 128, 128, 8
    $region9: #{tpu_custom_call.1} parent=1 // pred_fallthru
      _
    // Predicated region
    $region10: #{tpu_custom_call.1} parent=1 // pred_check
      _
    $region11: #{tpu_custom_call.1} parent=1 // pred_check_branch
      %49 = sbr.rel (0) target = $region13
    $region12: #{tpu_custom_call.1} parent=1 // pred_region
      %51 = dma.done [#allocation4], 256
    $region13: #{tpu_custom_call.1} parent=1 // pred_fallthru
      _
    // Predicated region
    $region14: #{tpu_custom_call.1} parent=1 // pred_check
      _
    $region15: #{tpu_custom_call.1} parent=1 // pred_check_branch
      %53 = sbr.rel (0) target = $region17
    $region16: #{tpu_custom_call.1} parent=1 // pred_region
      %55 = dma.done [#allocation7], 256
    $region17: #{tpu_custom_call.1} parent=1 // pred_fallthru
      _
    %s56 = sadd.s32 0, 0
    %p57 = scmp.lt.s32.totalorder %s56, 0
    %s58 = scalar_select %p57, %s56, 0
    %s59 = smul.u32 2, %s58
    %s60 = sadd.s32 0, 0
    %p61 = scmp.lt.s32.totalorder %s60, 0
    %s62 = scalar_select %p61, %s60, 0
    %s63 = smul.u32 2, %s62
    %p64 = scmp.eq.s32.totalorder 0, 0
    // Predicated region
    $region18: #{tpu_custom_call.1} parent=1 // pred_check
      %p65 = pneg %p64
    $region19: #{tpu_custom_call.1} parent=1 // pred_check_branch
      %67 = sbr.rel (%p65) target = $region21
    $region20: #{tpu_custom_call.1} parent=1 // pred_region
      %68 = vst [vmem:[#allocation2] sm:$0xff] 0.0
    $region21: #{tpu_custom_call.1} parent=1 // pred_fallthru
      _
    %v69 = vld [vmem:[#allocation3] sm:$0xff]
    %v70 = vld [vmem:[#allocation3 + $0x8] sm:$0xff]
    %v71 = vld [vmem:[#allocation6] sm:$0xff]
    %v72 = vld [vmem:[#allocation6 + $0x8] sm:$0xff]
    %v73 = vsub.f32 %v69, %v71
    %v74 = vsub.f32 %v70, %v72
    %v75 = vmul.f32 %v73, %v73
    %v76 = vmul.f32 %v74, %v74
    %s77 = sadd.s32 0, 0
    %s78 = sadd.s32 %s77, 1
    %s79 = smul.u32 %s78, 16
    %p80 = scmp.le.s32.totalorder %s79, 16
    // Predicated region
    $region22: #{tpu_custom_call.1} parent=1 // pred_check
      %p81 = pneg %p80
    $region23: #{tpu_custom_call.1} parent=1 // pred_check_branch
      %83 = sbr.rel (%p81) target = $region25
    $region24: #{tpu_custom_call.1} parent=1 // pred_region
      %v84 = vld [vmem:[#allocation2] sm:$0xff]
      %v85 = vadd.f32 %v75, %v76
      %v86 = vadd.f32 %v84, %v85
      %87 = vst [vmem:[#allocation2] sm:$0xff] %v86
    $region25: #{tpu_custom_call.1} parent=1 // pred_fallthru
      _
    %p88 = scmp.gt.s32.totalorder %s79, 16
    // Predicated region
    $region26: #{tpu_custom_call.1} parent=1 // pred_check
      %p89 = pneg %p88
    $region27: #{tpu_custom_call.1} parent=1 // pred_check_branch
      %91 = sbr.rel (%p89) target = $region29
    $region28: #{tpu_custom_call.1} parent=1 // pred_region
      %v92 = vlaneseq
      %v93 = vshrl.u32 %v92, 7
      %v94 = vadd.s32 %v93, 8
      %s95 = smul.u32 %s77, 16
      %v96 = vstv %s95
      %v97 = vadd.s32 %v96, %v93
      %v98 = vadd.s32 %v96, %v94
      %vm99 = vcmp.lt.s32.totalorder %v97, 16
      %vm100 = vcmp.lt.s32.totalorder %v98, 16
      %v101 = vsel %vm99, %v75, 0.0
      %v102 = vsel %vm100, %v76, 0.0
      %v103 = vld [vmem:[#allocation2] sm:$0xff]
      %v104 = vadd.f32 %v101, %v102
      %v105 = vadd.f32 %v103, %v104
      %106 = vst [vmem:[#allocation2] sm:$0xff] %v105
    $region29: #{tpu_custom_call.1} parent=1 // pred_fallthru
      _
    // Predicated region
    $region30: #{tpu_custom_call.1} parent=1 // pred_check
      %p107 = pneg %p64
    $region31: #{tpu_custom_call.1} parent=1 // pred_check_branch
      %109 = sbr.rel (%p107) target = $region33
    $region32: #{tpu_custom_call.1} parent=1 // pred_region
      %v110 = vld [vmem:[#allocation2] sm:$0xff]
      %111 = vadd.xlane.f32.xlu0 %v110
      %v112 = vpop.xlane.xlu0 %111
      %v113 = vrot.slane %v112, 4
      %v114 = vadd.f32 %v112, %v113
      %v115 = vrot.slane %v114, 2
      %v116 = vadd.f32 %v114, %v115
      %v117 = vrot.slane %v116, 1
      %v118 = vadd.f32 %v116, %v117
      %s119 = vtos %v118
      %s120 = scalar_lea.smem [#allocation8], 0
      %121 = sst [smem:[%s120]] %s119
    $region33: #{tpu_custom_call.1} parent=1 // pred_fallthru
      _
    // Predicated region
    $region34: #{tpu_custom_call.1} parent=1 // pred_check
      _
    $region35: #{tpu_custom_call.1} parent=1 // pred_check_branch
      %123 = sbr.rel (0) target = $region37
    $region36: #{tpu_custom_call.1} parent=1 // pred_region
      %125 = vsyncadd [#allocation5], 0
      %s127 = sshll.u32 %s2, 4
      %s128 = int_to_ptr.hbm [resolvable:$true] %s127
      %130 = dma.smem_to_hbm [#allocation8], 16, %s128, [#allocation5]
    $region37: #{tpu_custom_call.1} parent=1 // pred_fallthru
      _
    // Predicated region
    $region38: #{tpu_custom_call.1} parent=1 // pred_check
      _
    $region39: #{tpu_custom_call.1} parent=1 // pred_check_branch
      %132 = sbr.rel (0) target = $region41
    $region40: #{tpu_custom_call.1} parent=1 // pred_region
      %134 = dma.done [#allocation5], 16
    $region41: #{tpu_custom_call.1} parent=1 // pred_fallthru
      _
    %135 = sfence
    %136 = vsyncpa [#allocation4], 1
    %137 = vsyncpa [#allocation7], 1
    %138 = vsyncpa [#allocation5], 1

</llo_original>
